<compile_context>
chip_gen: v6e
topology: v6e:2x2x1
jax: 0.10.0
libtpu: 0.0.40
codegen_flags: <defaults>
</compile_context>

<pallas_src>
import jax
import jax.numpy as jnp
from jax.experimental import pallas as pl
from jax.experimental.pallas import tpu as pltpu


def _generator_kernel(x_ref, w_ref, b_ref, o_ref):
    # ---- projection: logits = x @ W + b on the MXU (bf16 in, f32 accumulate) ----
    x = x_ref[...].astype(jnp.bfloat16)                      # (TM, D)
    w = w_ref[...].astype(jnp.bfloat16)                      # (D, V)
    logits = jnp.dot(x, w, preferred_element_type=jnp.float32)
    logits = logits + b_ref[...].astype(jnp.float32)         # b: (1, V)

    # ---- log_softmax over the last (vocab) dim, all in f32 ----
    m = jnp.max(logits, axis=-1, keepdims=True)
    shifted = logits - m
    lse = jnp.log(jnp.sum(jnp.exp(shifted), axis=-1, keepdims=True))
    o_ref[...] = (shifted - lse).astype(o_ref.dtype)


def _round_up(n, m):
    return ((n + m - 1) // m) * m


def generator(x, w, b, *, tm=256):
    """log_softmax(x @ w + b, axis=-1) fused in one Pallas kernel.

    x: (B, S, D) activations
    w: (D, V)    projection weight (transposed vs. torch's (V, D) layout)
    b: (V,)      projection bias
    """
    B, S, D = x.shape
    V = w.shape[1]
    R = B * S
    x2 = x.reshape(R, D)

    # Row-tile size: multiple of 8 (sublane), capped so tiny demos stay 1 tile.
    tm = min(tm, _round_up(R, 8))
    r_pad = _round_up(R, tm)
    if r_pad != R:
        x2 = jnp.pad(x2, ((0, r_pad - R), (0, 0)))

    out = pl.pallas_call(
        _generator_kernel,
        out_shape=jax.ShapeDtypeStruct((r_pad, V), x.dtype),
        grid=(r_pad // tm,),
        in_specs=[
            pl.BlockSpec((tm, D), lambda i: (i, 0)),   # activation row tile (pipelined)
            pl.BlockSpec((D, V), lambda i: (0, 0)),    # weight: resident across tiles
            pl.BlockSpec((1, V), lambda i: (0, 0)),    # bias: resident across tiles
        ],
        out_specs=pl.BlockSpec((tm, V), lambda i: (i, 0)),
        compiler_params=pltpu.CompilerParams(
            dimension_semantics=("parallel",),          # shard row tiles across TCs
        ),
    )(x2, w, b.reshape(1, V))

    return out[:R].reshape(B, S, V)


if __name__ == "__main__":
    key = jax.random.PRNGKey(0)
    k_x, k_w, k_b = jax.random.split(key, 3)

    B, S, D, V = 2, 8, 32, 64       # batch=2, seq=8, d_model=32, vocab=64
    x = jax.random.normal(k_x, (B, S, D), dtype=jnp.float32)

    # nn.Linear(d_model, vocab) parameters (stored as (D, V) for the matmul)
    w = jax.random.normal(k_w, (D, V), dtype=jnp.float32) / jnp.sqrt(
        jnp.float32(D))
    b = jax.random.normal(k_b, (V,), dtype=jnp.float32) * 0.01

    out = generator(x, w, b)
    jax.block_until_ready(out)

    # sanity: shape/dtype preserved and rows are valid log-probabilities
    assert out.shape == (B, S, V) and out.dtype == x.dtype
    row_sums = jnp.exp(out).sum(-1)
    assert bool(jnp.allclose(row_sums, 1.0, atol=1e-3))
    print("KERNEL_OK")
</pallas_src>

<mosaic_0001>
module attributes {stable_mosaic.version = 11 : i64} {
  func.func @_generator_kernel(%arg0: i32, %arg1: memref<16x32xf32, #tpu.memory_space<vmem>>, %arg2: memref<32x64xf32, #tpu.memory_space<vmem>>, %arg3: memref<1x64xf32, #tpu.memory_space<vmem>>, %arg4: memref<16x64xf32, #tpu.memory_space<vmem>>) attributes {dimension_semantics = [#tpu.dimension_semantics<parallel>], iteration_bounds = array<i64: 1>, scalar_prefetch = 0 : i64, scratch_operands = 0 : i64, tpu.core_type = #tpu.core_type<tc>, window_params = [{transform_indices = @transform_0, window_bounds = array<i64: 16, 32>}, {pipeline_mode = #tpu.pipeline_mode<synchronous>, transform_indices = @transform_1, window_bounds = array<i64: 32, 64>}, {pipeline_mode = #tpu.pipeline_mode<synchronous>, transform_indices = @transform_2, window_bounds = array<i64: 1, 64>}, {transform_indices = @transform_3, window_bounds = array<i64: 16, 64>}]} {
    %c0 = arith.constant 0 : index
    %c0_0 = arith.constant 0 : index
    %0 = vector.load %arg1[%c0, %c0_0] : memref<16x32xf32, #tpu.memory_space<vmem>>, vector<16x32xf32>
    %1 = arith.truncf %0 : vector<16x32xf32> to vector<16x32xbf16>
    %c0_1 = arith.constant 0 : index
    %c0_2 = arith.constant 0 : index
    %2 = vector.load %arg2[%c0_1, %c0_2] : memref<32x64xf32, #tpu.memory_space<vmem>>, vector<32x64xf32>
    %3 = arith.truncf %2 : vector<32x64xf32> to vector<32x64xbf16>
    %cst = arith.constant dense<0.000000e+00> : vector<16x64xf32>
    %4 = tpu.matmul %1, %3, %cst {dimension_numbers = #tpu.dot_dimension_numbers<[1], [0], [0], [1], [0, 0, 1, 1], [], []>} : vector<16x32xbf16>, vector<32x64xbf16>, vector<16x64xf32> -> vector<16x64xf32>
    %c0_3 = arith.constant 0 : index
    %c0_4 = arith.constant 0 : index
    %5 = vector.load %arg3[%c0_3, %c0_4] : memref<1x64xf32, #tpu.memory_space<vmem>>, vector<1x64xf32>
    %6 = vector.broadcast %5 : vector<1x64xf32> to vector<16x64xf32>
    %7 = arith.addf %4, %6 : vector<16x64xf32>
    %cst_5 = arith.constant dense<0xFF800000> : vector<16xf32>
    %8 = vector.multi_reduction <maximumf>, %7, %cst_5 [1] : vector<16x64xf32> to vector<16xf32>
    %9 = vector.shape_cast %8 : vector<16xf32> to vector<16x1xf32>
    %10 = vector.broadcast %9 : vector<16x1xf32> to vector<16x64xf32>
    %11 = arith.subf %7, %10 : vector<16x64xf32>
    %12 = math.exp %11 : vector<16x64xf32>
    %cst_6 = arith.constant dense<0.000000e+00> : vector<16xf32>
    %13 = vector.multi_reduction <add>, %12, %cst_6 [1] : vector<16x64xf32> to vector<16xf32>
    %14 = vector.shape_cast %13 : vector<16xf32> to vector<16x1xf32>
    %15 = math.log %14 : vector<16x1xf32>
    %16 = vector.broadcast %15 : vector<16x1xf32> to vector<16x64xf32>
    %17 = arith.subf %11, %16 : vector<16x64xf32>
    %c0_7 = arith.constant 0 : index
    %c0_8 = arith.constant 0 : index
    %18 = vector.load %arg4[%c0_7, %c0_8] : memref<16x64xf32, #tpu.memory_space<vmem>>, vector<16x64xf32>
    tpu.vector_store %arg4[%c0_7, %c0_8], %17 {strides = array<i32>} : memref<16x64xf32, #tpu.memory_space<vmem>>, vector<16x64xf32>,
    return
  }
  func.func @transform_0(%arg0: i32) -> (i32, i32) {
    %c0_i32 = arith.constant 0 : i32
    %c0_i32_0 = arith.constant 0 : i32
    return %arg0, %c0_i32 : i32, i32
  }
  func.func @transform_1(%arg0: i32) -> (i32, i32) {
    %c0_i32 = arith.constant 0 : i32
    %c0_i32_0 = arith.constant 0 : i32
    %c0_i32_1 = arith.constant 0 : i32
    return %c0_i32, %c0_i32_0 : i32, i32
  }
  func.func @transform_2(%arg0: i32) -> (i32, i32) {
    %c0_i32 = arith.constant 0 : i32
    %c0_i32_0 = arith.constant 0 : i32
    %c0_i32_1 = arith.constant 0 : i32
    return %c0_i32, %c0_i32_0 : i32, i32
  }
  func.func @transform_3(%arg0: i32) -> (i32, i32) {
    %c0_i32 = arith.constant 0 : i32
    %c0_i32_0 = arith.constant 0 : i32
    return %arg0, %c0_i32 : i32, i32
  }
}

</mosaic_0001>

<llo_original>
// kernel: tpu_custom_call.1
$region0: #{tpu_custom_call.1}
  #allocation0 [shape = 'u32[]', space=smem, size = 0x4, offset = 0x4, fixed_abs, tag = 'smem constant byte address 0x4 - core index']
  #allocation1 [shape = 'u32[144,128]{1,0:T(1,128)}', space=vmem, size = 0x12000, scoped, tag = 'internal scratch']
  %s0 = inlined_call_operand.hbm [shape: f32[16,32], index: 0, kind: input, shape index: {}]
  %s1 = inlined_call_operand.hbm [shape: f32[32,64], index: 1, kind: input, shape index: {}]
  %s2 = inlined_call_operand.vmem [shape: f32[1,64], index: 2, kind: input, shape index: {}]
  %s3 = inlined_call_operand.hbm [shape: f32[16,64], index: 3, kind: output, shape index: {}]
  %s4 = sld [smem:[#allocation0]]
  $region30: #{tpu_custom_call.1} parent=0
    _
  %s6 = ssub.s32 1, %s4
  %s7 = scalar_select 0, %s6, %s4
  $region1: #{tpu_custom_call.1} parent=0
    #allocation2 [shape = 'u8[8192]{0}', space=vmem, size = 0x2000, scoped, tag = 'input window, operand 0, single buffered']
    #allocation3 [shape = 's32[1]{0}', space=sflag, size = 0x4, scoped, tag = 'scoped memory for tpu_custom_call.1']
    #allocation4 [shape = 's32[1]{0}', space=sflag, size = 0x4, scoped, tag = 'scoped memory for tpu_custom_call.1']
    #allocation5 [shape = 'u8[16384]{0}', space=vmem, size = 0x4000, scoped, tag = 'input window, operand 1, single buffered']
    #allocation6 [shape = 's32[1]{0}', space=sflag, size = 0x4, scoped, tag = 'scoped memory for tpu_custom_call.1']
    #allocation7 [shape = 'u8[8192]{0}', space=vmem, size = 0x2000, scoped, tag = 'output window, operand 0, single buffered']
    %8 = vsyncpa [#allocation3], 0
    %9 = vsyncpa [#allocation6], 0
    %10 = vsyncpa [#allocation4], 0
    // Predicated region
    $region2: #{tpu_custom_call.1} parent=1 // pred_check
      _
    $region3: #{tpu_custom_call.1} parent=1 // pred_check_branch
      %12 = sbr.rel (0) target = $region5
    $region4: #{tpu_custom_call.1} parent=1 // pred_region
      %s14 = ssub.s32 256, 256
      %15 = vsyncadd [#allocation3], %s14
      %s16 = sshll.u32 [#allocation2], 4
      %s17 = int_to_ptr.vmem [resolvable:$true] %s16
      %22 = dma.hbm_to_vmem [thread:$0]  %s0, 256, %s17, [#allocation3], 128, 128, 8
    $region5: #{tpu_custom_call.1} parent=1 // pred_fallthru
      _
    // Predicated region
    $region6: #{tpu_custom_call.1} parent=1 // pred_check
      _
    $region7: #{tpu_custom_call.1} parent=1 // pred_check_branch
      %24 = sbr.rel (0) target = $region9
    $region8: #{tpu_custom_call.1} parent=1 // pred_region
      %s26 = ssub.s32 512, 512
      %27 = vsyncadd [#allocation6], %s26
      %s28 = sshll.u32 [#allocation5], 4
      %s29 = int_to_ptr.vmem [resolvable:$true] %s28
      %34 = dma.hbm_to_vmem [thread:$0]  %s1, 512, %s29, [#allocation6], 128, 128, 8
    $region9: #{tpu_custom_call.1} parent=1 // pred_fallthru
      _
    // Predicated region
    $region10: #{tpu_custom_call.1} parent=1 // pred_check
      _
    $region11: #{tpu_custom_call.1} parent=1 // pred_check_branch
      %36 = sbr.rel (0) target = $region13
    $region12: #{tpu_custom_call.1} parent=1 // pred_region
      _
    $region13: #{tpu_custom_call.1} parent=1 // pred_fallthru
      _
    // Predicated region
    $region14: #{tpu_custom_call.1} parent=1 // pred_check
      _
    $region15: #{tpu_custom_call.1} parent=1 // pred_check_branch
      %38 = sbr.rel (0) target = $region17
    $region16: #{tpu_custom_call.1} parent=1 // pred_region
      %39 = dma.done [#allocation3], 256
    $region17: #{tpu_custom_call.1} parent=1 // pred_fallthru
      _
    // Predicated region
    $region18: #{tpu_custom_call.1} parent=1 // pred_check
      _
    $region19: #{tpu_custom_call.1} parent=1 // pred_check_branch
      %41 = sbr.rel (0) target = $region21
    $region20: #{tpu_custom_call.1} parent=1 // pred_region
      %42 = dma.done [#allocation6], 512
    $region21: #{tpu_custom_call.1} parent=1 // pred_fallthru
      _
    %v44 = vld [vmem:[#allocation2] sm:$0xff]
    %v45 = vld [vmem:[#allocation2 + $0x8] sm:$0xff]
    %v46 = vpack.c.bf16 %v45, %v44
    %v47 = vld [vmem:[#allocation5] sm:$0xff]
    %v48 = vld [vmem:[#allocation5 + $0x8] sm:$0xff]
    %v49 = vld [vmem:[#allocation5 + $0x10] sm:$0xff]
    %v50 = vld [vmem:[#allocation5 + $0x18] sm:$0xff]
    %v51 = vpack.c.bf16 %v48, %v47
    %v52 = vpack.c.bf16 %v50, %v49
    %v53 = vld [vmem:[%s2] sm:$0x1]
    %v55 = vlaneseq
    %v56 = vshrl.u32 %v55, 7
    %v57 = vsub.s32 0, %v56
    %v58 = vrot.slane %v53, %v57
    %vm60 = vcmask 261120
    %v62 = vsel %vm60, %v46, 0
    %64 = vmatprep.subr.bf16.mxu0 0
    %65 = vmatpush1.bf16.msra.mxu0 0
    %66 = vmatprep.subr.bf16.mxu0 0
    %67 = vmatpush1.bf16.msra.mxu0 0
    %68 = vmatprep.subr.bf16.mxu0 0
    %69 = vmatpush1.bf16.msra.mxu0 0
    %70 = vmatprep.subr.bf16.mxu0 0
    %71 = vmatpush1.bf16.msra.mxu0 0
    %72 = vmatprep.subr.bf16.mxu0 0
    %73 = vmatpush1.bf16.msra.mxu0 0
    %74 = vmatprep.subr.bf16.mxu0 0
    %75 = vmatpush1.bf16.msra.mxu0 0
    %76 = vmatprep.subr.bf16.mxu0 0
    %77 = vmatpush1.bf16.msra.mxu0 %v52
    %78 = vmatprep.subr.bf16.mxu0 0
    %79 = vmatpush1.bf16.msra.mxu0 %v51
    %80 = vmatprep.subr.bf16.mxu0 0
    %81 = vmatpush2.bf16.msra.mxu0 0
    %82 = vmatprep.subr.bf16.mxu0 0
    %83 = vmatpush2.bf16.msra.mxu0 0
    %84 = vmatprep.subr.bf16.mxu0 0
    %85 = vmatpush2.bf16.msra.mxu0 0
    %86 = vmatprep.subr.bf16.mxu0 0
    %87 = vmatpush2.bf16.msra.mxu0 0
    %88 = vmatprep.subr.bf16.mxu0 0
    %89 = vmatpush2.bf16.msra.mxu0 0
    %90 = vmatprep.subr.bf16.mxu0 0
    %91 = vmatpush2.bf16.msra.mxu0 0
    %92 = vmatprep.subr.bf16.mxu0 0
    %93 = vmatpush2.bf16.msra.mxu0 0
    %94 = vmatprep.subr.bf16.mxu0 0
    %95 = vmatpush2.bf16.msra.mxu0 0
    %96 = vmatprep.mubr.bf16.mxu0 0
    %97 = vmatmul.mubr.bf16.gmra.mxu0 %v62
    %v98 = vpop.f32.mrf.mxu0
    %v99 = vadd.f32 %v58, %v98
    %v100 = vpop.f32.mrf.mxu0
    %v101 = vpop.f32.mrf.mxu0
    %v102 = vadd.f32 %v58, %v101
    %v103 = vpop.f32.mrf.mxu0
    %104 = vdwg.mxu0
    %vm105 = vcmask 523264
    %v106 = vsel %vm105, %v99, -inf
    %107 = vmax.xlane.f32.xlu0 %v106
    %v108 = vpop.xlane.xlu0 %107
    %v109 = vsel %vm105, %v102, -inf
    %110 = vmax.xlane.f32.xlu0 %v109
    %v111 = vpop.xlane.xlu0 %110
    %v112 = vsub.f32 %v99, %v108
    %v113 = vsub.f32 %v102, %v111
    %v114 = vmul.f32 %v112, 1.442695
    %v115 = vpow.pop %v114
    %v116 = vmul.f32 %v113, 1.442695
    %v117 = vpow.pop %v116
    %v118 = vsel %vm105, %v115, 0.0
    %119 = vadd.xlane.f32.xlu0 %v118
    %v120 = vpop.xlane.xlu0 %119
    %v121 = vsel %vm105, %v117, 0.0
    %122 = vadd.xlane.f32.xlu0 %v121
    %v123 = vpop.xlane.xlu0 %122
    %v124 = vlog2.pop %v120
    %v125 = vmul.f32 %v124, 0.6931472
    %v126 = vlog2.pop %v123
    %v127 = vmul.f32 %v126, 0.6931472
    %v128 = vsub.f32 %v112, %v125
    %v129 = vsub.f32 %v113, %v127
    %130 = vst.msk [vmem:[#allocation7] sm:$0xff] %vm105, %v128
    %131 = vst.msk [vmem:[#allocation7 + $0x8] sm:$0xff] %vm105, %v129
    // Predicated region
    $region22: #{tpu_custom_call.1} parent=1 // pred_check
      _
    $region23: #{tpu_custom_call.1} parent=1 // pred_check_branch
      %133 = sbr.rel (0) target = $region25
    $region24: #{tpu_custom_call.1} parent=1 // pred_region
      %s135 = ssub.s32 256, 256
      %136 = vsyncadd [#allocation4], %s135
      %s137 = sshll.u32 [#allocation7], 4
      %s138 = int_to_ptr.vmem [resolvable:$true] %s137
      %143 = dma.vmem_to_hbm [thread:$0]  %s138, 256, %s3, [#allocation4], 128, 128, 8
    $region25: #{tpu_custom_call.1} parent=1 // pred_fallthru
      _
    // Predicated region
    $region26: #{tpu_custom_call.1} parent=1 // pred_check
      _
    $region27: #{tpu_custom_call.1} parent=1 // pred_check_branch
      %145 = sbr.rel (0) target = $region29
    $region28: #{tpu_custom_call.1} parent=1 // pred_region
      %146 = dma.done [#allocation4], 256
    $region29: #{tpu_custom_call.1} parent=1 // pred_fallthru
      _
    %147 = vsyncpa [#allocation3], 1
    %148 = vsyncpa [#allocation6], 1
    %149 = vsyncpa [#allocation4], 1

</llo_original>
